<compile_context>
chip_gen: v7x
topology: tpu7x:2x2x1
jax: 0.10.0
libtpu: 0.0.40
codegen_flags: <defaults>
</compile_context>

<pallas_src>
import jax
import jax.numpy as jnp
from jax.experimental import pallas as pl
from jax.experimental.pallas import tpu as pltpu


def _conv3x3_elu_kernel(x_ref, w_ref, b_ref, o_ref):
    # x_ref: (1, 9*C, THW) bf16  im2col tile (lane axis = flattened H*W tile)
    # w_ref: (O, 9*C)      bf16  folded conv weights
    # b_ref: (O, 1)        f32   bias
    # o_ref: (1, O, THW)   f32   output tile (lane-dense store)
    acc = jnp.dot(w_ref[...], x_ref[0],
                  preferred_element_type=jnp.float32)          # (O, THW), MXU, f32 acc
    acc = acc + b_ref[...]                                      # per-channel bias (single hoisted broadcast)
    # ELU (alpha=1). exp(min(x,0)) - 1 differs from expm1 by < 1.2e-7 in f32;
    # expm1 is not guaranteed to lower in Mosaic, so keep the safe form.
    neg = jnp.exp(jnp.minimum(acc, 0.0)) - 1.0
    out = jnp.where(acc > 0, acc, neg)
    o_ref[0] = out.astype(o_ref.dtype)


def _round_up(v, m):
    return ((v + m - 1) // m) * m


def _pick_hw_tile(total, k, o, align=128):
    """Largest lane-aligned divisor of H*W that keeps the in/out blocks ~<= 2 MiB each."""
    budget = 2 * 1024 * 1024
    cap = min(budget // max(1, k * 2), budget // max(1, o * 4))  # bf16 in, f32 out
    cap = max(align, (cap // align) * align)
    if total <= cap:
        return total
    best = total
    t = align
    while t <= cap:
        if total % t == 0:
            best = t
        t += align
    return best


def conv_block(x, weight, bias):
    """ReflectionPad2d(1) -> Conv2d(C, O, 3) -> ELU.

    x: (N, C, H, W) f32.  weight: (O, C, 3, 3) f32.  bias: (O,) f32.
    Returns (N, O, H, W) f32.
    """
    N, C, H, W = x.shape
    O = weight.shape[0]
    HW = H * W
    K = 9 * C

    # --- wrapper-side layout plumbing (plain XLA, outside the kernel) ---
    x_pad = jnp.pad(x, ((0, 0), (0, 0), (1, 1), (1, 1)), mode="reflect")
    # im2col, tap-major: index along axis 1 is (kh*3 + kw)*C + c
    cols = jnp.stack(
        [x_pad[:, :, kh:kh + H, kw:kw + W] for kh in range(3) for kw in range(3)],
        axis=1)                                     # (N, 9, C, H, W)
    x_col = cols.reshape(N, K, HW).astype(jnp.bfloat16)
    # fold weights to (O, 9*C) with matching (tap-major, c-minor) ordering
    w_fold = weight.transpose(0, 2, 3, 1).reshape(O, K).astype(jnp.bfloat16)
    b2d = bias.reshape(O, 1).astype(jnp.float32)

    thw = _pick_hw_tile(HW, K, O)
    n_hw = HW // thw

    # Explicit scoped-VMEM budget: double-buffered in/out blocks + weights + bias,
    # padded to (sublane, 128) tiles (bf16 packs 16 rows/sublane-tile).
    bytes_x = 2 * _round_up(K, 16) * _round_up(thw, 128) * 2
    bytes_o = 2 * _round_up(O, 8) * _round_up(thw, 128) * 4
    bytes_w = 2 * _round_up(O, 16) * _round_up(K, 128) * 2
    bytes_b = 2 * _round_up(O, 8) * 128 * 4
    vmem_limit = min(64 * 1024 * 1024,
                     max(16 * 1024 * 1024,
                         2 * (bytes_x + bytes_o + bytes_w + bytes_b)))

    out_flat = pl.pallas_call(
        _conv3x3_elu_kernel,
        out_shape=jax.ShapeDtypeStruct((N, O, HW), x.dtype),
        grid_spec=pltpu.PrefetchScalarGridSpec(
            num_scalar_prefetch=0,
            grid=(N, n_hw),
            in_specs=[
                pl.BlockSpec((1, K, thw), lambda n, j: (n, 0, j)),
                pl.BlockSpec((O, K), lambda n, j: (0, 0)),
                pl.BlockSpec((O, 1), lambda n, j: (0, 0)),
            ],
            out_specs=pl.BlockSpec((1, O, thw), lambda n, j: (n, 0, j)),
        ),
        compiler_params=pltpu.CompilerParams(
            dimension_semantics=("parallel", "parallel"),
            vmem_limit_bytes=vmem_limit,
        ),
    )(x_col, w_fold, b2d)

    return out_flat.reshape(N, O, H, W)


def _reference_bf16(x, weight, bias):
    """Pure-JAX reference with the same bf16-operand / f32-accumulate precision."""
    x_pad = jnp.pad(x, ((0, 0), (0, 0), (1, 1), (1, 1)), mode="reflect")
    y = jax.lax.conv_general_dilated(
        x_pad.astype(jnp.bfloat16), weight.astype(jnp.bfloat16),
        window_strides=(1, 1), padding="VALID",
        dimension_numbers=("NCHW", "OIHW", "NCHW"),
        preferred_element_type=jnp.float32,
    )
    y = y + bias.reshape(1, -1, 1, 1).astype(jnp.float32)
    return jnp.where(y > 0, y, jnp.exp(jnp.minimum(y, 0.0)) - 1.0)


if __name__ == "__main__":
    key = jax.random.PRNGKey(0)
    k_x, k_w, k_b = jax.random.split(key, 3)

    N, C_in, C_out, H, W = 2, 4, 8, 16, 16

    x = jax.random.normal(k_x, (N, C_in, H, W), dtype=jnp.float32)
    # Deterministic "init": uniform(-bound, bound) like PyTorch conv default.
    fan_in = C_in * 3 * 3
    bound = 1.0 / (fan_in ** 0.5)
    weight = jax.random.uniform(k_w, (C_out, C_in, 3, 3), jnp.float32, -bound, bound)
    bias = jax.random.uniform(k_b, (C_out,), jnp.float32, -bound, bound)

    out = jax.block_until_ready(conv_block(x, weight, bias))

    ref = _reference_bf16(x, weight, bias)
    assert out.shape == (N, C_out, H, W)
    assert out.dtype == jnp.float32
    assert jnp.allclose(out, ref, atol=2e-3, rtol=2e-3), float(jnp.max(jnp.abs(out - ref)))

    print("KERNEL_OK")
</pallas_src>

<mosaic_0001>
module attributes {stable_mosaic.version = 11 : i64} {
  func.func @_conv3x3_elu_kernel(%arg0: i32, %arg1: i32, %arg2: memref<1x36x256xbf16, #tpu.memory_space<vmem>>, %arg3: memref<8x36xbf16, #tpu.memory_space<vmem>>, %arg4: memref<8x1xf32, #tpu.memory_space<vmem>>, %arg5: memref<1x8x256xf32, #tpu.memory_space<vmem>>) attributes {dimension_semantics = [#tpu.dimension_semantics<parallel>, #tpu.dimension_semantics<parallel>], iteration_bounds = array<i64: 2, 1>, scalar_prefetch = 0 : i64, scratch_operands = 0 : i64, tpu.core_type = #tpu.core_type<tc>, window_params = [{transform_indices = @transform_0, window_bounds = array<i64: 1, 36, 256>}, {pipeline_mode = #tpu.pipeline_mode<synchronous>, transform_indices = @transform_1, window_bounds = array<i64: 8, 36>}, {pipeline_mode = #tpu.pipeline_mode<synchronous>, transform_indices = @transform_2, window_bounds = array<i64: 8, 1>}, {transform_indices = @transform_3, window_bounds = array<i64: 1, 8, 256>}]} {
    %c0 = arith.constant 0 : index
    %c0_0 = arith.constant 0 : index
    %0 = vector.load %arg3[%c0, %c0_0] : memref<8x36xbf16, #tpu.memory_space<vmem>>, vector<8x36xbf16>
    %c0_1 = arith.constant 0 : index
    %c0_2 = arith.constant 0 : index
    %c0_3 = arith.constant 0 : index
    %1 = vector.load %arg2[%c0_1, %c0_2, %c0_3] : memref<1x36x256xbf16, #tpu.memory_space<vmem>>, vector<1x36x256xbf16>
    %2 = vector.shape_cast %1 : vector<1x36x256xbf16> to vector<36x256xbf16>
    %cst = arith.constant dense<0.000000e+00> : vector<8x256xf32>
    %3 = tpu.matmul %0, %2, %cst {dimension_numbers = #tpu.dot_dimension_numbers<[1], [0], [0], [1], [0, 0, 1, 1], [], []>} : vector<8x36xbf16>, vector<36x256xbf16>, vector<8x256xf32> -> vector<8x256xf32>
    %c0_4 = arith.constant 0 : index
    %c0_5 = arith.constant 0 : index
    %4 = vector.load %arg4[%c0_4, %c0_5] : memref<8x1xf32, #tpu.memory_space<vmem>>, vector<8x1xf32>
    %5 = vector.broadcast %4 : vector<8x1xf32> to vector<8x256xf32>
    %6 = arith.addf %3, %5 : vector<8x256xf32>
    %cst_6 = arith.constant 0.000000e+00 : f32
    %7 = vector.broadcast %cst_6 : f32 to vector<8x256xf32>
    %8 = arith.minimumf %6, %7 : vector<8x256xf32>
    %9 = math.exp %8 : vector<8x256xf32>
    %cst_7 = arith.constant 1.000000e+00 : f32
    %10 = vector.broadcast %cst_7 : f32 to vector<8x256xf32>
    %11 = arith.subf %9, %10 : vector<8x256xf32>
    %cst_8 = arith.constant 0.000000e+00 : f32
    %12 = vector.broadcast %cst_8 : f32 to vector<8x256xf32>
    %13 = arith.cmpf ogt, %6, %12 : vector<8x256xf32>
    %14 = arith.select %13, %6, %11 : vector<8x256xi1>, vector<8x256xf32>
    %c0_9 = arith.constant 0 : index
    %c0_10 = arith.constant 0 : index
    %c0_11 = arith.constant 0 : index
    %15 = vector.load %arg5[%c0_9, %c0_10, %c0_11] : memref<1x8x256xf32, #tpu.memory_space<vmem>>, vector<1x8x256xf32>
    %16 = vector.shape_cast %15 : vector<1x8x256xf32> to vector<8x256xf32>
    %17 = vector.shape_cast %14 : vector<8x256xf32> to vector<1x8x256xf32>
    tpu.vector_store %arg5[%c0_9, %c0_10, %c0_11], %17 {strides = array<i32>} : memref<1x8x256xf32, #tpu.memory_space<vmem>>, vector<1x8x256xf32>,
    return
  }
  func.func @transform_0(%arg0: i32, %arg1: i32) -> (i32, i32, i32) {
    %c0_i32 = arith.constant 0 : i32
    %c0_i32_0 = arith.constant 0 : i32
    return %arg0, %c0_i32, %arg1 : i32, i32, i32
  }
  func.func @transform_1(%arg0: i32, %arg1: i32) -> (i32, i32) {
    %c0_i32 = arith.constant 0 : i32
    %c0_i32_0 = arith.constant 0 : i32
    %c0_i32_1 = arith.constant 0 : i32
    return %c0_i32, %c0_i32_0 : i32, i32
  }
  func.func @transform_2(%arg0: i32, %arg1: i32) -> (i32, i32) {
    %c0_i32 = arith.constant 0 : i32
    %c0_i32_0 = arith.constant 0 : i32
    %c0_i32_1 = arith.constant 0 : i32
    return %c0_i32, %c0_i32_0 : i32, i32
  }
  func.func @transform_3(%arg0: i32, %arg1: i32) -> (i32, i32, i32) {
    %c0_i32 = arith.constant 0 : i32
    %c0_i32_0 = arith.constant 0 : i32
    return %arg0, %c0_i32, %arg1 : i32, i32, i32
  }
}

</mosaic_0001>

<llo_original>
// kernel: tpu_custom_call.1
$region0: #{tpu_custom_call.1}
  #allocation0 [shape = 'u32[]', space=smem, size = 0x4, offset = 0x4, fixed_abs, tag = 'smem constant byte address 0x4 - core index']
  #allocation1 [shape = 'u32[144,128]{1,0:T(1,128)}', space=vmem, size = 0x12000, scoped, tag = 'internal scratch']
  %s0 = inlined_call_operand.vmem [shape: bf16[2,36,256], index: 0, kind: input, shape index: {}]
  %s1 = inlined_call_operand.vmem [shape: bf16[8,36], index: 1, kind: input, shape index: {}]
  %s2 = inlined_call_operand.vmem [shape: f32[8,1], index: 2, kind: input, shape index: {}]
  %s3 = inlined_call_operand.hbm [shape: f32[2,8,256], index: 3, kind: output, shape index: {}]
  %s4 = sld [smem:[#allocation0]]
  $region45: #{tpu_custom_call.1} parent=0
    _
  %s6 = ssub.s32 1, %s4
  %s7 = scalar_select 0, %s6, %s4
  $region1: #{tpu_custom_call.1} parent=0
    #allocation2 [shape = 'u8[16384]{0}', space=vmem, size = 0x4000, scoped, tag = 'output window, operand 0']
    #allocation3 [shape = 's32[2]{0}', space=sflag, size = 0x8, scoped, tag = 'scoped memory for tpu_custom_call.1']
    %8 = vsyncpa [#allocation3], 0
    %s9 = scalar_lea.sflag [#allocation3], 1
    %10 = vsyncpa %s9, 0
    loop: start=0, step=1, limit=4
    $region2: #{tpu_custom_call.1} parent=1 // loop_pre_header
      _
    $region3: #{tpu_custom_call.1} parent=1 // loop_header
      %s12 = sphi 0, %s16
      %p13 = scmp.ge.s32.totalorder %s12, 4
      %s19 = sphi 0, %s31
      %s20 = sphi 0, %s27
      %s21 = sphi 0, %s19
      %s22 = sphi 0, %s20
      %s23 = sphi 0, %s21
      %s24 = sphi 0, %s22
      %s36 = sphi 0, %s38
      %s39 = sphi 0, %s36
      %s40 = sphi 0, %s39
      %s56 = sphi 0, %s40
      %s60 = sphi 0, %s60
      %s62 = sphi 0, %s60
      %s63 = sphi 0, %s62
      %s77 = sphi 0, %s63
      %s81 = sphi 0, %s81
      %s83 = sphi 0, %s81
      %s84 = sphi 0, %s83
      %s98 = sphi 0, %s84
      %s106 = sphi 0, %s108
      %s109 = sphi 0, %s106
      %s110 = sphi 0, %s109
      %s126 = sphi 0, %s110
    $region4: #{tpu_custom_call.1} parent=1 // loop_header_branch
      %15 = sbr.rel (%p13) target = $region8
    $region5: #{tpu_custom_call.1} parent=1 // loop_body
      %s17 = ssub.s32 %s12, 1
      %s18 = ssub.s32 %s12, 2
      %s25 = sadd.s32 1, %s20
      %p26 = scmp.ge.s32.totalorder %s25, 1
      %s27 = scalar_select %p26, 0, %s25
      %s28 = sadd.s32 1, %s19
      %s29 = scalar_select %p26, %s28, %s19
      %p30 = scmp.ge.s32.totalorder %s29, 2
      %s31 = scalar_select %p30, 0, %s29
      %s32 = ssub.s32 %s19, %s31
      %s33 = ssub.s32 %s20, %s27
      %s34 = sor.u32 %s32, %s33
      %p35 = scmp.eq.s32.totalorder %s34, 0
      %s37 = sadd.s32 %s36, 1
      %s38 = scalar_select %p35, %s36, %s37
      %p41 = pneg %p35
      %p42 = scmp.eq.s32.totalorder %s12, 1
      %p43 = por %p41, %p42
      %p44 = scmp.ne.s32.totalorder %s36, %s39
      %p45 = scmp.eq.s32.totalorder %s12, 0
      %p46 = por %p44, %p45
      %p47 = scmp.ne.s32.totalorder %s36, %s39
      %p48 = scmp.eq.s32.totalorder %s17, 1
      %p49 = por %p47, %p48
      %p50 = scmp.ne.s32.totalorder %s39, %s40
      %p51 = scmp.eq.s32.totalorder %s17, 0
      %p52 = por %p50, %p51
      %p53 = scmp.ne.s32.totalorder %s39, %s40
      %p54 = scmp.eq.s32.totalorder %s18, 1
      %p55 = por %p53, %p54
      %p57 = scmp.ne.s32.totalorder %s40, %s56
      %p58 = scmp.eq.s32.totalorder %s18, 0
      %p59 = por %p57, %p58
      %s61 = sadd.s32 %s60, 1
      %p64 = scmp.eq.s32.totalorder %s12, 1
      %p65 = scmp.ne.s32.totalorder %s60, %s62
      %p66 = scmp.eq.s32.totalorder %s12, 0
      %p67 = por %p65, %p66
      %p68 = scmp.ne.s32.totalorder %s60, %s62
      %p69 = scmp.eq.s32.totalorder %s17, 1
      %p70 = por %p68, %p69
      %p71 = scmp.ne.s32.totalorder %s62, %s63
      %p72 = scmp.eq.s32.totalorder %s17, 0
      %p73 = por %p71, %p72
      %p74 = scmp.ne.s32.totalorder %s62, %s63
      %p75 = scmp.eq.s32.totalorder %s18, 1
      %p76 = por %p74, %p75
      %p78 = scmp.ne.s32.totalorder %s63, %s77
      %p79 = scmp.eq.s32.totalorder %s18, 0
      %p80 = por %p78, %p79
      %s82 = sadd.s32 %s81, 1
      %p85 = scmp.eq.s32.totalorder %s12, 1
      %p86 = scmp.ne.s32.totalorder %s81, %s83
      %p87 = scmp.eq.s32.totalorder %s12, 0
      %p88 = por %p86, %p87
      %p89 = scmp.ne.s32.totalorder %s81, %s83
      %p90 = scmp.eq.s32.totalorder %s17, 1
      %p91 = por %p89, %p90
      %p92 = scmp.ne.s32.totalorder %s83, %s84
      %p93 = scmp.eq.s32.totalorder %s17, 0
      %p94 = por %p92, %p93
      %p95 = scmp.ne.s32.totalorder %s83, %s84
      %p96 = scmp.eq.s32.totalorder %s18, 1
      %p97 = por %p95, %p96
      %p99 = scmp.ne.s32.totalorder %s84, %s98
      %p100 = scmp.eq.s32.totalorder %s18, 0
      %p101 = por %p99, %p100
      %s102 = ssub.s32 %s19, %s31
      %s103 = ssub.s32 %s20, %s27
      %s104 = sor.u32 %s102, %s103
      %p105 = scmp.eq.s32.totalorder %s104, 0
      %s107 = sadd.s32 %s106, 1
      %s108 = scalar_select %p105, %s106, %s107
      %p111 = pneg %p105
      %p112 = scmp.eq.s32.totalorder %s12, 1
      %p113 = por %p111, %p112
      %p114 = scmp.ne.s32.totalorder %s106, %s109
      %p115 = scmp.eq.s32.totalorder %s12, 0
      %p116 = por %p114, %p115
      %p117 = scmp.ne.s32.totalorder %s106, %s109
      %p118 = scmp.eq.s32.totalorder %s17, 1
      %p119 = por %p117, %p118
      %p120 = scmp.ne.s32.totalorder %s109, %s110
      %p121 = scmp.eq.s32.totalorder %s17, 0
      %p122 = por %p120, %p121
      %p123 = scmp.ne.s32.totalorder %s109, %s110
      %p124 = scmp.eq.s32.totalorder %s18, 1
      %p125 = por %p123, %p124
      %p127 = scmp.ne.s32.totalorder %s110, %s126
      %p128 = scmp.eq.s32.totalorder %s18, 0
      %p129 = por %p127, %p128
      %p130 = scmp.le.s32.totalorder 1, %s12
      %p131 = scmp.lt.s32.totalorder %s12, 3
      %p132 = pnand %p130, %p131
      %p133 = pneg %p132
      // Predicated region
      $region9: #{tpu_custom_call.1} parent=5 // pred_check
        _
      $region10: #{tpu_custom_call.1} parent=5 // pred_check_branch
        %135 = sbr.rel (%p132) target = $region12
      $region11: #{tpu_custom_call.1} parent=5 // pred_region
        %s136 = ssub.s32 %s12, 1
        // Predicated region
        $region13: #{tpu_custom_call.1} parent=11 // pred_check
          %p137 = pneg %p73
        $region14: #{tpu_custom_call.1} parent=11 // pred_check_branch
          %139 = sbr.rel (%p137) target = $region16
        $region15: #{tpu_custom_call.1} parent=11 // pred_region
          _
        $region16: #{tpu_custom_call.1} parent=11 // pred_fallthru
          _
        // Predicated region
        $region17: #{tpu_custom_call.1} parent=11 // pred_check
          %p140 = pneg %p94
        $region18: #{tpu_custom_call.1} parent=11 // pred_check_branch
          %142 = sbr.rel (%p140) target = $region20
        $region19: #{tpu_custom_call.1} parent=11 // pred_region
          _
        $region20: #{tpu_custom_call.1} parent=11 // pred_fallthru
          _
      $region12: #{tpu_custom_call.1} parent=5 // pred_fallthru
        _
      %p143 = scmp.lt.s32.totalorder %s12, 2
      // Predicated region
      $region21: #{tpu_custom_call.1} parent=5 // pred_check
        %p144 = pneg %p143
      $region22: #{tpu_custom_call.1} parent=5 // pred_check_branch
        %146 = sbr.rel (%p144) target = $region24
      $region23: #{tpu_custom_call.1} parent=5 // pred_region
        // Predicated region
        $region25: #{tpu_custom_call.1} parent=23 // pred_check
          %p147 = pneg %p46
        $region26: #{tpu_custom_call.1} parent=23 // pred_check_branch
          %149 = sbr.rel (%p147) target = $region28
        $region27: #{tpu_custom_call.1} parent=23 // pred_region
          %s150 = smul.u32 2, %s20
          %p151 = scmp.lt.s32.totalorder %s19, 1
          %s152 = scalar_select %p151, %s19, 1
          %p153 = scmp.lt.s32.totalorder %s150, 1
          %s154 = scalar_select %p153, %s150, 1
          %s155 = smul.addr %s152, 10
          %s156 = sadd.s32 %s154, %s155
          %s157 = smul.addr %s156, 4
          %s158 = scalar_lea.vmem %s0, %s157
          %s159 = smul.u32 2, %s20
        $region28: #{tpu_custom_call.1} parent=23 // pred_fallthru
          _
      $region24: #{tpu_custom_call.1} parent=5 // pred_fallthru
        _
      %p160 = scmp.le.s32.totalorder 1, %s12
      %p161 = scmp.lt.s32.totalorder %s12, 3
      %p162 = pnand %p160, %p161
      %p163 = pneg %p162
      // Predicated region
      $region29: #{tpu_custom_call.1} parent=5 // pred_check
        _
      $region30: #{tpu_custom_call.1} parent=5 // pred_check_branch
        %165 = sbr.rel (%p162) target = $region32
      $region31: #{tpu_custom_call.1} parent=5 // pred_region
        %s166 = ssub.s32 %s12, 1
        %s167 = smul.u32 2, %s22
        %p168 = scmp.lt.s32.totalorder %s21, 1
        %s169 = scalar_select %p168, %s21, 1
        %p170 = scmp.lt.s32.totalorder %s167, 1
        %s171 = scalar_select %p170, %s167, 1
        %s172 = smul.addr %s169, 10
        %s173 = sadd.s32 %s171, %s172
        %s174 = smul.addr %s173, 4
        %s175 = scalar_lea.vmem %s0, %s174
        %p176 = pneg %p52
        %p177 = pneg %p49
        %p178 = pneg %p73
        %p179 = pneg %p70
        %p180 = pneg %p94
        %p181 = pneg %p91
        %p182 = pneg %p122
        %p183 = pneg %p119
        %s184 = sand.u32 %s109, 1
        %s185 = scalar_lea.sflag [#allocation3], %s184
        %s186 = sand.u32 %s109, 1
        %s187 = smul.addr %s186, 16
        %s188 = scalar_lea.vmem [#allocation2], %s187
        %s189 = smul.u32 2, %s22
        %p190 = scmp.lt.s32.totalorder %s21, 1
        %s191 = scalar_select %p190, %s21, 1
        %p192 = scmp.lt.s32.totalorder %s189, 1
        %s193 = scalar_select %p192, %s189, 1
        %s194 = smul.addr %s191, 10
        %s195 = sadd.s32 %s193, %s194
        %s196 = smul.addr %s195, 4
        %s197 = scalar_lea.vmem %s0, %s196
        %s198 = smul.u32 2, %s22
        %s199 = smul.u32 2, %s22
        %v201 = vld [vmem:[%s1] sm:$0xf]
        %v202 = vld [vmem:[%s197] sm:$0xff]
        %v203 = vld [vmem:[%s197 + $0x8] sm:$0xff]
        %v204 = vld [vmem:[%s197 + $0x10] sm:$0xff]
        %v205 = vld [vmem:[%s197 + $0x18] sm:$0xff]
        %v206 = vld [vmem:[%s197 + $0x20] sm:$0x33]
        %v207 = vld [vmem:[%s2] sm:$0xff]
        %209 = vset.pattern.permute.xlu0 0
        %210 = vperm.xlu0 %209, %v207
        %v211 = vpop.permute.xlu0 %210
        %v218 = vunpack.c.l.b16 %v202
        %v219 = vunpack.c.h.b16 %v202
        %v220 = vunpack.c.l.b16 %v203
        %v221 = vunpack.c.h.b16 %v203
        %v222 = vunpack.c.l.b16 %v204
        %v223 = vunpack.c.h.b16 %v204
        %v224 = vunpack.c.l.b16 %v205
        %v225 = vunpack.c.h.b16 %v205
        %v226 = vunpack.c.l.b16 %v206
        %v227 = vunpack.c.h.b16 %v206
        %v228 = vpack.c.b16 %v220, %v218
        %v229 = vpack.c.b16 %v221, %v219
        %v230 = vpack.c.b16 %v224, %v222
        %v231 = vpack.c.b16 %v225, %v223
        %v232 = vpack.c.b16 %v226, %v226
        %v233 = vpack.c.b16 %v227, %v227
        %vm238 = vcmask 293888
        %v240 = vsel %vm238, %v201, 0
        %vm242 = vcmask 1041408
        %v244 = vsel %vm242, %v232, 0
        %v247 = vsel %vm242, %v233, 0
        %249 = vmatprep.subr.bf16.mxu0 %v229
        %250 = vmatpush1.bf16.msra.mxu0 %v228
        %251 = vmatprep.subr.bf16.mxu0 %v231
        %252 = vmatpush1.bf16.msra.mxu0 %v230
        %253 = vmatprep.subr.bf16.mxu0 %v247
        %254 = vmatpush1.bf16.msra.mxu0 %v244
        %255 = vmatprep.subr.bf16.mxu0 0
        %256 = vmatpush1.bf16.msra.mxu0 0
        %257 = vmatprep.subr.bf16.mxu0 0
        %258 = vmatpush1.bf16.msra.mxu0 0
        %259 = vmatprep.subr.bf16.mxu0 0
        %260 = vmatpush1.bf16.msra.mxu0 0
        %261 = vmatprep.subr.bf16.mxu0 0
        %262 = vmatpush1.bf16.msra.mxu0 0
        %263 = vmatprep.subr.bf16.mxu0 0
        %264 = vmatpush1.bf16.msra.mxu0 0
        %265 = vmatprep.subr.bf16.mxu0 0
        %266 = vmatpush1.bf16.msra.mxu0 0
        %267 = vmatprep.subr.bf16.mxu0 0
        %268 = vmatpush1.bf16.msra.mxu0 0
        %269 = vmatprep.subr.bf16.mxu0 0
        %270 = vmatpush1.bf16.msra.mxu0 0
        %271 = vmatprep.subr.bf16.mxu0 0
        %272 = vmatpush1.bf16.msra.mxu0 0
        %273 = vmatprep.subr.bf16.mxu0 0
        %274 = vmatpush1.bf16.msra.mxu0 0
        %275 = vmatprep.subr.bf16.mxu0 0
        %276 = vmatpush1.bf16.msra.mxu0 0
        %277 = vmatprep.subr.bf16.mxu0 0
        %278 = vmatpush1.bf16.msra.mxu0 0
        %279 = vmatprep.subr.bf16.mxu0 0
        %280 = vmatpush1.bf16.msra.mxu0 0
        %281 = vmatprep.mubr.bf16.mxu0 0
        %282 = vmatmul.mubr.bf16.gmra.mrb[0].mxu0 %v240
        %v283 = vpop.f32.mrb[0].mxu0
        %v284 = vadd.f32 %v211, %v283
        %v285 = vpop.f32.mrb[0].mxu0
        %v286 = vadd.f32 %v211, %v285
        %v287 = vpop.f32.mrb[0].mxu0
        %v288 = vpop.f32.mrb[0].mxu0
        %289 = vdwg.mxu0
        %v290 = vmin.f32 %v284, 0.0
        %v291 = vmin.f32 %v286, 0.0
        %v292 = vmul.f32 %v290, 1.442695
        %v293 = vpow.pop %v292
        %v294 = vmul.f32 %v291, 1.442695
        %v295 = vpow.pop %v294
        %v296 = vsub.f32 %v293, 1.0
        %v297 = vsub.f32 %v295, 1.0
        %vm298 = vcmp.gt.f32.partialorder %v284, 0.0
        %vm299 = vcmp.gt.f32.partialorder %v286, 0.0
        %v300 = vsel %vm298, %v284, %v296
        %v301 = vsel %vm299, %v286, %v297
        %302 = vst [vmem:[%s188] sm:$0xff] %v300
        %303 = vst [vmem:[%s188 + $0x8] sm:$0xff] %v301
        %s304 = sand.u32 %s109, 1
        %s305 = scalar_lea.sflag [#allocation3], %s304
        %s306 = sand.u32 %s109, 1
        %s307 = smul.addr %s306, 16
        %s308 = scalar_lea.vmem [#allocation2], %s307
        // Predicated region
        $region33: #{tpu_custom_call.1} parent=31 // pred_check
          %p309 = pneg %p119
        $region34: #{tpu_custom_call.1} parent=31 // pred_check_branch
          %311 = sbr.rel (%p309) target = $region36
        $region35: #{tpu_custom_call.1} parent=31 // pred_region
          %s312 = smul.u32 2, %s22
          %s314 = ssub.s32 256, 256
          %315 = vsyncadd %s305, %s314
          %s316 = smul.addr %s21, 2
          %s317 = sadd.s32 %s312, %s316
          %s318 = smul.addr %s317, 128
          %s319 = scalar_lea.hbm %s3, %s318
          %s321 = sshll.u32 %s308, 4
          %s322 = int_to_ptr.vmem [resolvable:$true] %s321
          %324 = dma.vmem_to_hbm [thread:$0]  %s322, 256, %s319, %s305
        $region36: #{tpu_custom_call.1} parent=31 // pred_fallthru
          _
      $region32: #{tpu_custom_call.1} parent=5 // pred_fallthru
        _
      %p325 = scmp.le.s32.totalorder 2, %s12
      // Predicated region
      $region37: #{tpu_custom_call.1} parent=5 // pred_check
        %p326 = pneg %p325
      $region38: #{tpu_custom_call.1} parent=5 // pred_check_branch
        %328 = sbr.rel (%p326) target = $region40
      $region39: #{tpu_custom_call.1} parent=5 // pred_region
        %s329 = ssub.s32 %s12, 2
        // Predicated region
        $region41: #{tpu_custom_call.1} parent=39 // pred_check
          %p330 = pneg %p125
        $region42: #{tpu_custom_call.1} parent=39 // pred_check_branch
          %332 = sbr.rel (%p330) target = $region44
        $region43: #{tpu_custom_call.1} parent=39 // pred_region
          %s333 = sand.u32 %s110, 1
          %s334 = scalar_lea.sflag [#allocation3], %s333
          %s335 = sand.u32 %s110, 1
          %s336 = smul.addr %s335, 16
          %s337 = scalar_lea.vmem [#allocation2], %s336
          %338 = dma.done %s334, 256
        $region44: #{tpu_custom_call.1} parent=39 // pred_fallthru
          _
      $region40: #{tpu_custom_call.1} parent=5 // pred_fallthru
        _
    $region6: #{tpu_custom_call.1} parent=1 // loop_footer
      %s16 = sadd.s32 1, %s12
    $region7: #{tpu_custom_call.1} parent=1 // loop_footer_branch
      %11 = sbr.rel target = $region3
    $region8: #{tpu_custom_call.1} parent=1 // loop_exit
      _
    %339 = vsyncpa [#allocation3], 1
    %s340 = scalar_lea.sflag [#allocation3], 1
    %341 = vsyncpa %s340, 1

</llo_original>
